<compile_context>
chip_gen: v7x
topology: tpu7x:2x2x1
jax: 0.10.0
libtpu: 0.0.40
codegen_flags: <defaults>
</compile_context>

<pallas_src>
import math

import jax
import jax.numpy as jnp
from jax.experimental import pallas as pl
from jax.experimental.pallas import tpu as pltpu


# ---------------------------------------------------------------------------
# Kernels
# ---------------------------------------------------------------------------
def _ae_kernel_resident(x_ref, we_ref, be_ref, wd_ref, bd_ref, o_ref):
    """Both (pre-transposed) weights resident in VMEM; one batch tile per grid step."""
    # Cast the x tile to the MXU compute dtype in-kernel (hidden under DMA/MXU).
    x = x_ref[...].astype(we_ref.dtype)
    # encode: (tb, E) @ (E, H) -> (tb, H), f32 accumulation on the MXU.
    h = jnp.dot(x, we_ref[...], preferred_element_type=jnp.float32)
    h = jnp.maximum(h + be_ref[...], 0.0)                     # bias + ReLU in f32
    # decode: cast hidden once to bf16, feed straight into the second MXU matmul.
    y = jnp.dot(h.astype(wd_ref.dtype), wd_ref[...],
                preferred_element_type=jnp.float32)
    o_ref[...] = (y + bd_ref[...]).astype(o_ref.dtype)


def _ae_kernel_streamed(x_ref, we_ref, be_ref, wd_ref, bd_ref, o_ref, acc_ref):
    """Hidden-dimension weight streaming: grid = (batch tiles, hidden tiles)."""
    k = pl.program_id(1)

    @pl.when(k == 0)
    def _():
        acc_ref[...] = jnp.zeros_like(acc_ref)

    x = x_ref[...].astype(we_ref.dtype)
    # encode slice: (tb, E) @ (E, tH) -> (tb, tH). Bias + ReLU are per hidden column,
    # so a hidden slice is complete without seeing the other hidden columns.
    h = jnp.dot(x, we_ref[...], preferred_element_type=jnp.float32)
    h = jnp.maximum(h + be_ref[...], 0.0)
    # decode partial sum: (tb, tH) @ (tH, E) -> (tb, E), accumulated in f32 VMEM.
    acc_ref[...] += jnp.dot(h.astype(wd_ref.dtype), wd_ref[...],
                            preferred_element_type=jnp.float32)

    @pl.when(k == pl.num_programs(1) - 1)
    def _():
        o_ref[...] = (acc_ref[...] + bd_ref[...]).astype(o_ref.dtype)


# ---------------------------------------------------------------------------
# Wrapper
# ---------------------------------------------------------------------------
def _round_up(x, m):
    return ((x + m - 1) // m) * m


def _buffered_const_supported():
    """Narrow feature probe for BlockSpec(pipeline_mode=pl.Buffered(1))."""
    if not hasattr(pl, "Buffered"):
        return False
    try:
        pl.BlockSpec((8, 128), lambda i: (0, 0), pipeline_mode=pl.Buffered(1))
    except TypeError:
        return False
    return True


def _vmem_limit_bytes():
    """Generation-aware VMEM budget: ~3/4 of capacity (48 MiB on v7x, ~96 MiB v5e/v6e)."""
    cap = None
    try:
        cap = getattr(pltpu.get_tpu_info(), "vmem_capacity_bytes", None)
    except Exception:  # hardware query only; never wraps the kernel launch
        cap = None
    if not cap:
        return 48 * 1024 * 1024
    return int(cap) * 3 // 4


def autoencoder_forward(x, encoder_weight, encoder_bias, decoder_weight, decoder_bias,
                        *, tile_b=None, tile_h=None, compute_dtype=jnp.bfloat16,
                        out_dtype=None, force_streaming=False):
    """x: (B, E); encoder_weight: (H, E); decoder_weight: (E, H) — PyTorch layouts."""
    B, E = x.shape
    H, E2 = encoder_weight.shape
    assert E2 == E and decoder_weight.shape == (E, H)
    assert encoder_bias.shape == (H,) and decoder_bias.shape == (E,)
    out_dtype = x.dtype if out_dtype is None else out_dtype   # set bf16 to halve writeback

    # Batch tile: multiple of 16 (bf16 sublane packing), 128-256 preferred. No forced
    # >=2-step split: on 1-TC chips the grid is a serial loop and splitting only costs.
    if tile_b is None:
        tile_b = min(256, B)
    tile_b = max(16, _round_up(min(tile_b, max(B, 16)), 16))
    num_b_tiles = pl.cdiv(B, tile_b)
    B_pad = num_b_tiles * tile_b

    # One-time wrapper transposes (amortized over all batch tiles): inside the kernel
    # both matmuls contract on (last, first) dims -> no per-step RHS transpose.
    we_t = encoder_weight.T.astype(compute_dtype)             # (E, H)
    wd_t = decoder_weight.T.astype(compute_dtype)             # (H, E)
    be = encoder_bias.reshape(1, H).astype(jnp.float32)
    bd = decoder_bias.reshape(1, E).astype(jnp.float32)

    # x stays in HBM in its original dtype; cast per-tile inside the kernel.
    x_in = x
    if B_pad != B:
        # TODO(synk): replace the ragged-tail zero-pad with a masked tail write at scale.
        x_in = jnp.pad(x, ((0, B_pad - B), (0, 0)))

    vmem_limit = _vmem_limit_bytes()
    buffered_ok = _buffered_const_supported()
    w_itemsize = jnp.dtype(compute_dtype).itemsize
    x_itemsize = jnp.dtype(x.dtype).itemsize
    o_itemsize = jnp.dtype(out_dtype).itemsize

    const_copies = 1 if buffered_ok else 2
    resident_bytes = const_copies * (2 * E * H * w_itemsize + (E + H) * 4)
    io_bytes = 2 * tile_b * E * (x_itemsize + o_itemsize)      # double-buffered x / out
    use_streaming = force_streaming or (resident_bytes + io_bytes > (vmem_limit * 3) // 5)

    cost = pl.CostEstimate(
        flops=4 * B_pad * E * H,                                # two matmuls, 2*M*K*N each
        transcendentals=0,
        bytes_accessed=(B_pad * E * (x_itemsize + o_itemsize)
                        + 2 * E * H * w_itemsize + (E + H) * 4))

    def const_spec(shape, index_map):
        # Grid-invariant inputs: single-buffer to halve their VMEM footprint.
        if buffered_ok:
            return pl.BlockSpec(shape, index_map, pipeline_mode=pl.Buffered(1))
        return pl.BlockSpec(shape, index_map)

    if not use_streaming:
        out = pl.pallas_call(
            _ae_kernel_resident,
            out_shape=jax.ShapeDtypeStruct((B_pad, E), out_dtype),
            grid_spec=pltpu.PrefetchScalarGridSpec(
                num_scalar_prefetch=0,
                grid=(num_b_tiles,),
                in_specs=[
                    pl.BlockSpec((tile_b, E), lambda i: (i, 0)),      # x tile (streamed)
                    const_spec((E, H), lambda i: (0, 0)),             # W_enc^T (resident)
                    const_spec((1, H), lambda i: (0, 0)),             # b_enc
                    const_spec((H, E), lambda i: (0, 0)),             # W_dec^T (resident)
                    const_spec((1, E), lambda i: (0, 0)),             # b_dec
                ],
                out_specs=pl.BlockSpec((tile_b, E), lambda i: (i, 0)),
            ),
            compiler_params=pltpu.CompilerParams(
                dimension_semantics=("parallel",),
                vmem_limit_bytes=vmem_limit),
            cost_estimate=cost,
        )(x_in, we_t, be, wd_t, bd)
    else:
        # Weight streaming over the hidden dim for large E/H (weights never resident).
        if tile_h is None:
            budget = vmem_limit // 2
            tile_h = budget // (4 * E * w_itemsize)             # double-buffered slices
        tile_h = max(128, (min(tile_h, max(H, 128)) // 128) * 128)
        num_h_tiles = pl.cdiv(H, tile_h)
        H_pad = num_h_tiles * tile_h
        if H_pad != H:
            # Zero-padded hidden columns give ReLU(0 + 0) = 0 and add nothing to decode.
            we_t = jnp.pad(we_t, ((0, 0), (0, H_pad - H)))
            wd_t = jnp.pad(wd_t, ((0, H_pad - H), (0, 0)))
            be = jnp.pad(be, ((0, 0), (0, H_pad - H)))

        out = pl.pallas_call(
            _ae_kernel_streamed,
            out_shape=jax.ShapeDtypeStruct((B_pad, E), out_dtype),
            grid_spec=pltpu.PrefetchScalarGridSpec(
                num_scalar_prefetch=0,
                grid=(num_b_tiles, num_h_tiles),
                in_specs=[
                    pl.BlockSpec((tile_b, E), lambda i, k: (i, 0)),    # x tile
                    pl.BlockSpec((E, tile_h), lambda i, k: (0, k)),    # W_enc^T slice
                    pl.BlockSpec((1, tile_h), lambda i, k: (0, k)),    # b_enc slice
                    pl.BlockSpec((tile_h, E), lambda i, k: (k, 0)),    # W_dec^T slice
                    const_spec((1, E), lambda i, k: (0, 0)),           # b_dec (invariant)
                ],
                out_specs=pl.BlockSpec((tile_b, E), lambda i, k: (i, 0)),
                scratch_shapes=[pltpu.VMEM((tile_b, E), jnp.float32)],
            ),
            compiler_params=pltpu.CompilerParams(
                dimension_semantics=("parallel", "arbitrary"),
                vmem_limit_bytes=vmem_limit),
            cost_estimate=cost,
        )(x_in, we_t, be, wd_t, bd)

    if B_pad != B:
        out = out[:B]
    return out


# ---------------------------------------------------------------------------
# Demo / correctness check
# ---------------------------------------------------------------------------
def xavier_uniform(key, shape, gain):
    # matches torch.nn.init.xavier_uniform_ for a 2-D (fan_out, fan_in) weight
    fan_out, fan_in = shape
    a = gain * math.sqrt(6.0 / (fan_in + fan_out))
    return jax.random.uniform(key, shape, jnp.float32, minval=-a, maxval=a)


def _reference_bf16(x, we, be, wd, bd):
    # Mimic the kernel's bf16 rounding with f32 accumulation -> tight check.
    xb = x.astype(jnp.bfloat16).astype(jnp.float32)
    web = we.astype(jnp.bfloat16).astype(jnp.float32)
    wdb = wd.astype(jnp.bfloat16).astype(jnp.float32)
    h = jnp.maximum(xb @ web.T + be, 0.0)
    h = h.astype(jnp.bfloat16).astype(jnp.float32)
    return h @ wdb.T + bd


if __name__ == "__main__":
    B, E, H = 16, 256, 128
    gain = math.sqrt(2.0)               # nn.init.calculate_gain('relu')

    key = jax.random.PRNGKey(0)
    k_x, k_we, k_wd = jax.random.split(key, 3)

    x = jax.random.normal(k_x, (B, E), jnp.float32)
    encoder_weight = xavier_uniform(k_we, (H, E), gain)    # (hidden, embedding)
    encoder_bias = jnp.zeros((H,), jnp.float32)
    decoder_weight = xavier_uniform(k_wd, (E, H), gain)    # (embedding, hidden)
    decoder_bias = jnp.zeros((E,), jnp.float32)

    # Resident-weights fast path.
    out = autoencoder_forward(x, encoder_weight, encoder_bias,
                              decoder_weight, decoder_bias)
    out = jax.block_until_ready(out)
    assert out.shape == (B, E)

    ref_bf16 = _reference_bf16(x, encoder_weight, encoder_bias,
                               decoder_weight, decoder_bias)
    assert jnp.allclose(out, ref_bf16, atol=2e-2, rtol=2e-2)

    h_f32 = jnp.maximum(x @ encoder_weight.T + encoder_bias, 0.0)
    ref_f32 = h_f32 @ decoder_weight.T + decoder_bias
    assert jnp.allclose(out, ref_f32, atol=1e-1, rtol=1e-1)

    # Hidden-dim weight-streaming path, exercised at small scale (H=256, tile_h=128
    # -> 2 accumulation steps along the 'arbitrary' grid axis).
    H2 = 256
    k_we2, k_wd2 = jax.random.split(jax.random.PRNGKey(1))
    encoder_weight2 = xavier_uniform(k_we2, (H2, E), gain)
    encoder_bias2 = jnp.zeros((H2,), jnp.float32)
    decoder_weight2 = xavier_uniform(k_wd2, (E, H2), gain)
    decoder_bias2 = jnp.zeros((E,), jnp.float32)

    out2 = autoencoder_forward(x, encoder_weight2, encoder_bias2,
                               decoder_weight2, decoder_bias2,
                               force_streaming=True, tile_h=128)
    out2 = jax.block_until_ready(out2)
    ref2 = _reference_bf16(x, encoder_weight2, encoder_bias2,
                           decoder_weight2, decoder_bias2)
    assert jnp.allclose(out2, ref2, atol=2e-2, rtol=2e-2)

    print("KERNEL_OK")
</pallas_src>

<mosaic_0001>
module attributes {stable_mosaic.version = 11 : i64} {
  func.func @_ae_kernel_resident(%arg0: i32, %arg1: memref<16x256xf32, #tpu.memory_space<vmem>>, %arg2: memref<256x128xbf16, #tpu.memory_space<vmem>>, %arg3: memref<1x128xf32, #tpu.memory_space<vmem>>, %arg4: memref<128x256xbf16, #tpu.memory_space<vmem>>, %arg5: memref<1x256xf32, #tpu.memory_space<vmem>>, %arg6: memref<16x256xf32, #tpu.memory_space<vmem>>) attributes {dimension_semantics = [#tpu.dimension_semantics<parallel>], iteration_bounds = array<i64: 1>, scalar_prefetch = 0 : i64, scratch_operands = 0 : i64, tpu.core_type = #tpu.core_type<tc>, window_params = [{transform_indices = @transform_0, window_bounds = array<i64: 16, 256>}, {pipeline_mode = #tpu.pipeline_mode<synchronous>, transform_indices = @transform_1, window_bounds = array<i64: 256, 128>}, {pipeline_mode = #tpu.pipeline_mode<synchronous>, transform_indices = @transform_2, window_bounds = array<i64: 1, 128>}, {pipeline_mode = #tpu.pipeline_mode<synchronous>, transform_indices = @transform_3, window_bounds = array<i64: 128, 256>}, {pipeline_mode = #tpu.pipeline_mode<synchronous>, transform_indices = @transform_4, window_bounds = array<i64: 1, 256>}, {transform_indices = @transform_5, window_bounds = array<i64: 16, 256>}]} {
    %c0 = arith.constant 0 : index
    %c0_0 = arith.constant 0 : index
    %0 = vector.load %arg1[%c0, %c0_0] : memref<16x256xf32, #tpu.memory_space<vmem>>, vector<16x256xf32>
    %1 = arith.truncf %0 : vector<16x256xf32> to vector<16x256xbf16>
    %c0_1 = arith.constant 0 : index
    %c0_2 = arith.constant 0 : index
    %2 = vector.load %arg2[%c0_1, %c0_2] : memref<256x128xbf16, #tpu.memory_space<vmem>>, vector<256x128xbf16>
    %cst = arith.constant dense<0.000000e+00> : vector<16x128xf32>
    %3 = tpu.matmul %1, %2, %cst {dimension_numbers = #tpu.dot_dimension_numbers<[1], [0], [0], [1], [0, 0, 1, 1], [], []>} : vector<16x256xbf16>, vector<256x128xbf16>, vector<16x128xf32> -> vector<16x128xf32>
    %c0_3 = arith.constant 0 : index
    %c0_4 = arith.constant 0 : index
    %4 = vector.load %arg3[%c0_3, %c0_4] : memref<1x128xf32, #tpu.memory_space<vmem>>, vector<1x128xf32>
    %5 = vector.broadcast %4 : vector<1x128xf32> to vector<16x128xf32>
    %6 = arith.addf %3, %5 : vector<16x128xf32>
    %cst_5 = arith.constant 0.000000e+00 : f32
    %7 = vector.broadcast %cst_5 : f32 to vector<16x128xf32>
    %8 = arith.maximumf %6, %7 : vector<16x128xf32>
    %9 = arith.truncf %8 : vector<16x128xf32> to vector<16x128xbf16>
    %c0_6 = arith.constant 0 : index
    %c0_7 = arith.constant 0 : index
    %10 = vector.load %arg4[%c0_6, %c0_7] : memref<128x256xbf16, #tpu.memory_space<vmem>>, vector<128x256xbf16>
    %cst_8 = arith.constant dense<0.000000e+00> : vector<16x256xf32>
    %11 = tpu.matmul %9, %10, %cst_8 {dimension_numbers = #tpu.dot_dimension_numbers<[1], [0], [0], [1], [0, 0, 1, 1], [], []>} : vector<16x128xbf16>, vector<128x256xbf16>, vector<16x256xf32> -> vector<16x256xf32>
    %c0_9 = arith.constant 0 : index
    %c0_10 = arith.constant 0 : index
    %12 = vector.load %arg5[%c0_9, %c0_10] : memref<1x256xf32, #tpu.memory_space<vmem>>, vector<1x256xf32>
    %13 = vector.broadcast %12 : vector<1x256xf32> to vector<16x256xf32>
    %14 = arith.addf %11, %13 : vector<16x256xf32>
    %c0_11 = arith.constant 0 : index
    %c0_12 = arith.constant 0 : index
    %15 = vector.load %arg6[%c0_11, %c0_12] : memref<16x256xf32, #tpu.memory_space<vmem>>, vector<16x256xf32>
    tpu.vector_store %arg6[%c0_11, %c0_12], %14 {strides = array<i32>} : memref<16x256xf32, #tpu.memory_space<vmem>>, vector<16x256xf32>,
    return
  }
  func.func @transform_0(%arg0: i32) -> (i32, i32) {
    %c0_i32 = arith.constant 0 : i32
    %c0_i32_0 = arith.constant 0 : i32
    return %arg0, %c0_i32 : i32, i32
  }
  func.func @transform_1(%arg0: i32) -> (i32, i32) {
    %c0_i32 = arith.constant 0 : i32
    %c0_i32_0 = arith.constant 0 : i32
    %c0_i32_1 = arith.constant 0 : i32
    return %c0_i32, %c0_i32_0 : i32, i32
  }
  func.func @transform_2(%arg0: i32) -> (i32, i32) {
    %c0_i32 = arith.constant 0 : i32
    %c0_i32_0 = arith.constant 0 : i32
    %c0_i32_1 = arith.constant 0 : i32
    return %c0_i32, %c0_i32_0 : i32, i32
  }
  func.func @transform_3(%arg0: i32) -> (i32, i32) {
    %c0_i32 = arith.constant 0 : i32
    %c0_i32_0 = arith.constant 0 : i32
    %c0_i32_1 = arith.constant 0 : i32
    return %c0_i32, %c0_i32_0 : i32, i32
  }
  func.func @transform_4(%arg0: i32) -> (i32, i32) {
    %c0_i32 = arith.constant 0 : i32
    %c0_i32_0 = arith.constant 0 : i32
    %c0_i32_1 = arith.constant 0 : i32
    return %c0_i32, %c0_i32_0 : i32, i32
  }
  func.func @transform_5(%arg0: i32) -> (i32, i32) {
    %c0_i32 = arith.constant 0 : i32
    %c0_i32_0 = arith.constant 0 : i32
    return %arg0, %c0_i32 : i32, i32
  }
}

</mosaic_0001>

<llo_original>
// kernel: tpu_custom_call.1
$region0: #{tpu_custom_call.1}
  #allocation0 [shape = 'u32[]', space=smem, size = 0x4, offset = 0x4, fixed_abs, tag = 'smem constant byte address 0x4 - core index']
  #allocation1 [shape = 'u32[144,128]{1,0:T(1,128)}', space=vmem, size = 0x12000, scoped, tag = 'internal scratch']
  %s0 = inlined_call_operand.hbm [shape: f32[16,256], index: 0, kind: input, shape index: {}]
  %s1 = inlined_call_operand.hbm [shape: bf16[256,128], index: 1, kind: input, shape index: {}]
  %s2 = inlined_call_operand.vmem [shape: f32[1,128], index: 2, kind: input, shape index: {}]
  %s3 = inlined_call_operand.hbm [shape: bf16[128,256], index: 3, kind: input, shape index: {}]
  %s4 = inlined_call_operand.vmem [shape: f32[1,256], index: 4, kind: input, shape index: {}]
  %s5 = inlined_call_operand.hbm [shape: f32[16,256], index: 5, kind: output, shape index: {}]
  %s6 = sld [smem:[#allocation0]]
  $region42: #{tpu_custom_call.1} parent=0
    _
  %s8 = ssub.s32 1, %s6
  %s9 = scalar_select 0, %s8, %s6
  $region1: #{tpu_custom_call.1} parent=0
    #allocation2 [shape = 'u8[16384]{0}', space=vmem, size = 0x4000, scoped, tag = 'input window, operand 0, single buffered']
    #allocation3 [shape = 's32[1]{0}', space=sflag, size = 0x4, scoped, tag = 'scoped memory for tpu_custom_call.1']
    #allocation4 [shape = 's32[1]{0}', space=sflag, size = 0x4, scoped, tag = 'scoped memory for tpu_custom_call.1']
    #allocation5 [shape = 'u8[65536]{0}', space=vmem, size = 0x10000, scoped, tag = 'input window, operand 1, single buffered']
    #allocation6 [shape = 's32[1]{0}', space=sflag, size = 0x4, scoped, tag = 'scoped memory for tpu_custom_call.1']
    #allocation7 [shape = 'u8[65536]{0}', space=vmem, size = 0x10000, scoped, tag = 'input window, operand 3, single buffered']
    #allocation8 [shape = 'u8[16384]{0}', space=vmem, size = 0x4000, scoped, tag = 'output window, operand 0, single buffered']
    %10 = vsyncpa [#allocation3], 0
    %11 = vsyncpa [#allocation6], 0
    %12 = vsyncpa [#allocation4], 0
    // Predicated region
    $region2: #{tpu_custom_call.1} parent=1 // pred_check
      _
    $region3: #{tpu_custom_call.1} parent=1 // pred_check_branch
      %14 = sbr.rel (0) target = $region5
    $region4: #{tpu_custom_call.1} parent=1 // pred_region
      %s16 = ssub.s32 512, 512
      %17 = vsyncadd [#allocation3], %s16
      %s18 = sshll.u32 [#allocation2], 4
      %s19 = int_to_ptr.vmem [resolvable:$true] %s18
      %24 = dma.hbm_to_vmem [thread:$0]  %s0, 512, %s19, [#allocation3], 256, 256, 16
    $region5: #{tpu_custom_call.1} parent=1 // pred_fallthru
      _
    // Predicated region
    $region6: #{tpu_custom_call.1} parent=1 // pred_check
      _
    $region7: #{tpu_custom_call.1} parent=1 // pred_check_branch
      %26 = sbr.rel (0) target = $region9
    $region8: #{tpu_custom_call.1} parent=1 // pred_region
      %s28 = ssub.s32 2048, 2048
      %29 = vsyncadd [#allocation6], %s28
      %s30 = sshll.u32 [#allocation5], 4
      %s31 = int_to_ptr.vmem [resolvable:$true] %s30
      %36 = dma.hbm_to_vmem [thread:$0]  %s1, 2048, %s31, [#allocation6], 64, 64, 4
    $region9: #{tpu_custom_call.1} parent=1 // pred_fallthru
      _
    // Predicated region
    $region10: #{tpu_custom_call.1} parent=1 // pred_check
      _
    $region11: #{tpu_custom_call.1} parent=1 // pred_check_branch
      %38 = sbr.rel (0) target = $region13
    $region12: #{tpu_custom_call.1} parent=1 // pred_region
      _
    $region13: #{tpu_custom_call.1} parent=1 // pred_fallthru
      _
    // Predicated region
    $region14: #{tpu_custom_call.1} parent=1 // pred_check
      _
    $region15: #{tpu_custom_call.1} parent=1 // pred_check_branch
      %40 = sbr.rel (0) target = $region17
    $region16: #{tpu_custom_call.1} parent=1 // pred_region
      %s42 = ssub.s32 2048, 2048
      %43 = vsyncadd [#allocation6], %s42
      %s44 = sshll.u32 [#allocation7], 4
      %s45 = int_to_ptr.vmem [resolvable:$true] %s44
      %50 = dma.hbm_to_vmem [thread:$0]  %s3, 2048, %s45, [#allocation6], 128, 128, 8
    $region17: #{tpu_custom_call.1} parent=1 // pred_fallthru
      _
    // Predicated region
    $region18: #{tpu_custom_call.1} parent=1 // pred_check
      _
    $region19: #{tpu_custom_call.1} parent=1 // pred_check_branch
      %52 = sbr.rel (0) target = $region21
    $region20: #{tpu_custom_call.1} parent=1 // pred_region
      _
    $region21: #{tpu_custom_call.1} parent=1 // pred_fallthru
      _
    // Predicated region
    $region22: #{tpu_custom_call.1} parent=1 // pred_check
      _
    $region23: #{tpu_custom_call.1} parent=1 // pred_check_branch
      %54 = sbr.rel (0) target = $region25
    $region24: #{tpu_custom_call.1} parent=1 // pred_region
      %55 = dma.done [#allocation3], 512
    $region25: #{tpu_custom_call.1} parent=1 // pred_fallthru
      _
    // Predicated region
    $region26: #{tpu_custom_call.1} parent=1 // pred_check
      _
    $region27: #{tpu_custom_call.1} parent=1 // pred_check_branch
      %57 = sbr.rel (0) target = $region29
    $region28: #{tpu_custom_call.1} parent=1 // pred_region
      %58 = dma.done [#allocation6], 2048
    $region29: #{tpu_custom_call.1} parent=1 // pred_fallthru
      _
    // Predicated region
    $region30: #{tpu_custom_call.1} parent=1 // pred_check
      _
    $region31: #{tpu_custom_call.1} parent=1 // pred_check_branch
      %60 = sbr.rel (0) target = $region33
    $region32: #{tpu_custom_call.1} parent=1 // pred_region
      %61 = dma.done [#allocation6], 2048
    $region33: #{tpu_custom_call.1} parent=1 // pred_fallthru
      _
    %v63 = vld [vmem:[#allocation2] sm:$0xff]
    %v64 = vld [vmem:[#allocation2 + $0x8] sm:$0xff]
    %v65 = vld [vmem:[#allocation2 + $0x10] sm:$0xff]
    %v66 = vld [vmem:[#allocation2 + $0x18] sm:$0xff]
    %v67 = vpack.c.bf16 %v65, %v63
    %v68 = vpack.c.bf16 %v66, %v64
    %v69 = vld [vmem:[#allocation5] sm:$0xf]
    %v70 = vld [vmem:[#allocation5 + $0x4] sm:$0xf]
    %v71 = vld [vmem:[#allocation5 + $0x8] sm:$0xf]
    %v72 = vld [vmem:[#allocation5 + $0xc] sm:$0xf]
    %v73 = vld [vmem:[#allocation5 + $0x10] sm:$0xf]
    %v74 = vld [vmem:[#allocation5 + $0x14] sm:$0xf]
    %v75 = vld [vmem:[#allocation5 + $0x18] sm:$0xf]
    %v76 = vld [vmem:[#allocation5 + $0x1c] sm:$0xf]
    %v77 = vld [vmem:[#allocation5 + $0x20] sm:$0xf]
    %v78 = vld [vmem:[#allocation5 + $0x24] sm:$0xf]
    %v79 = vld [vmem:[#allocation5 + $0x28] sm:$0xf]
    %v80 = vld [vmem:[#allocation5 + $0x2c] sm:$0xf]
    %v81 = vld [vmem:[#allocation5 + $0x30] sm:$0xf]
    %v82 = vld [vmem:[#allocation5 + $0x34] sm:$0xf]
    %v83 = vld [vmem:[#allocation5 + $0x38] sm:$0xf]
    %v84 = vld [vmem:[#allocation5 + $0x3c] sm:$0xf]
    %v85 = vld [vmem:[#allocation5 + $0x40] sm:$0xf]
    %v86 = vld [vmem:[#allocation5 + $0x44] sm:$0xf]
    %v87 = vld [vmem:[#allocation5 + $0x48] sm:$0xf]
    %v88 = vld [vmem:[#allocation5 + $0x4c] sm:$0xf]
    %v89 = vld [vmem:[#allocation5 + $0x50] sm:$0xf]
    %v90 = vld [vmem:[#allocation5 + $0x54] sm:$0xf]
    %v91 = vld [vmem:[#allocation5 + $0x58] sm:$0xf]
    %v92 = vld [vmem:[#allocation5 + $0x5c] sm:$0xf]
    %v93 = vld [vmem:[#allocation5 + $0x60] sm:$0xf]
    %v94 = vld [vmem:[#allocation5 + $0x64] sm:$0xf]
    %v95 = vld [vmem:[#allocation5 + $0x68] sm:$0xf]
    %v96 = vld [vmem:[#allocation5 + $0x6c] sm:$0xf]
    %v97 = vld [vmem:[#allocation5 + $0x70] sm:$0xf]
    %v98 = vld [vmem:[#allocation5 + $0x74] sm:$0xf]
    %v99 = vld [vmem:[#allocation5 + $0x78] sm:$0xf]
    %v100 = vld [vmem:[#allocation5 + $0x7c] sm:$0xf]
    %v101 = vld [vmem:[%s2] sm:$0x1]
    %v103 = vlaneseq
    %v104 = vshrl.u32 %v103, 7
    %v105 = vsub.s32 0, %v104
    %v106 = vrot.slane %v101, %v105
    %v140 = vunpack.c.l.b16 %v69
    %v141 = vunpack.c.l.b16 %v70
    %v142 = vunpack.c.l.b16 %v71
    %v143 = vunpack.c.l.b16 %v72
    %v144 = vunpack.c.l.b16 %v73
    %v145 = vunpack.c.l.b16 %v74
    %v146 = vunpack.c.l.b16 %v75
    %v147 = vunpack.c.l.b16 %v76
    %v148 = vunpack.c.l.b16 %v77
    %v149 = vunpack.c.l.b16 %v78
    %v150 = vunpack.c.l.b16 %v79
    %v151 = vunpack.c.l.b16 %v80
    %v152 = vunpack.c.l.b16 %v81
    %v153 = vunpack.c.l.b16 %v82
    %v154 = vunpack.c.l.b16 %v83
    %v155 = vunpack.c.l.b16 %v84
    %v156 = vunpack.c.l.b16 %v85
    %v157 = vunpack.c.l.b16 %v86
    %v158 = vunpack.c.l.b16 %v87
    %v159 = vunpack.c.l.b16 %v88
    %v160 = vunpack.c.l.b16 %v89
    %v161 = vunpack.c.l.b16 %v90
    %v162 = vunpack.c.l.b16 %v91
    %v163 = vunpack.c.l.b16 %v92
    %v164 = vunpack.c.l.b16 %v93
    %v165 = vunpack.c.l.b16 %v94
    %v166 = vunpack.c.l.b16 %v95
    %v167 = vunpack.c.l.b16 %v96
    %v168 = vunpack.c.l.b16 %v97
    %v169 = vunpack.c.l.b16 %v98
    %v170 = vunpack.c.l.b16 %v99
    %v171 = vunpack.c.l.b16 %v100
    %v172 = vpack.c.b16 %v141, %v140
    %v173 = vpack.c.b16 %v143, %v142
    %v174 = vpack.c.b16 %v145, %v144
    %v175 = vpack.c.b16 %v147, %v146
    %v176 = vpack.c.b16 %v149, %v148
    %v177 = vpack.c.b16 %v151, %v150
    %v178 = vpack.c.b16 %v153, %v152
    %v179 = vpack.c.b16 %v155, %v154
    %v180 = vpack.c.b16 %v157, %v156
    %v181 = vpack.c.b16 %v159, %v158
    %v182 = vpack.c.b16 %v161, %v160
    %v183 = vpack.c.b16 %v163, %v162
    %v184 = vpack.c.b16 %v165, %v164
    %v185 = vpack.c.b16 %v167, %v166
    %v186 = vpack.c.b16 %v169, %v168
    %v187 = vpack.c.b16 %v171, %v170
    %204 = vmatprep.subr.bf16.mxu0 0
    %205 = vmatpush1.bf16.msra.mxu0 %v172
    %206 = vmatprep.subr.bf16.mxu0 0
    %207 = vmatpush1.bf16.msra.mxu0 %v173
    %208 = vmatprep.subr.bf16.mxu0 0
    %209 = vmatpush1.bf16.msra.mxu0 %v174
    %210 = vmatprep.subr.bf16.mxu0 0
    %211 = vmatpush1.bf16.msra.mxu0 %v175
    %212 = vmatprep.subr.bf16.mxu0 0
    %213 = vmatpush1.bf16.msra.mxu0 %v176
    %214 = vmatprep.subr.bf16.mxu0 0
    %215 = vmatpush1.bf16.msra.mxu0 %v177
    %216 = vmatprep.subr.bf16.mxu0 0
    %217 = vmatpush1.bf16.msra.mxu0 %v178
    %218 = vmatprep.subr.bf16.mxu0 0
    %219 = vmatpush1.bf16.msra.mxu0 %v179
    %220 = vmatprep.subr.bf16.mxu0 0
    %221 = vmatpush1.bf16.msra.mxu0 %v180
    %222 = vmatprep.subr.bf16.mxu0 0
    %223 = vmatpush1.bf16.msra.mxu0 %v181
    %224 = vmatprep.subr.bf16.mxu0 0
    %225 = vmatpush1.bf16.msra.mxu0 %v182
    %226 = vmatprep.subr.bf16.mxu0 0
    %227 = vmatpush1.bf16.msra.mxu0 %v183
    %228 = vmatprep.subr.bf16.mxu0 0
    %229 = vmatpush1.bf16.msra.mxu0 %v184
    %230 = vmatprep.subr.bf16.mxu0 0
    %231 = vmatpush1.bf16.msra.mxu0 %v185
    %232 = vmatprep.subr.bf16.mxu0 0
    %233 = vmatpush1.bf16.msra.mxu0 %v186
    %234 = vmatprep.subr.bf16.mxu0 0
    %235 = vmatpush1.bf16.msra.mxu0 %v187
    %236 = vmatprep.mubr.bf16.mxu0 %v68
    %237 = vmatmul.mubr.bf16.gmra.mrb[0].mxu0 %v67
    %v238 = vpop.f32.mrb[0].mxu0
    %v239 = vadd.f32 %v106, %v238
    %v240 = vpop.f32.mrb[0].mxu0
    %v241 = vpop.f32.mrb[0].mxu0
    %v242 = vadd.f32 %v106, %v241
    %v243 = vpop.f32.mrb[0].mxu0
    %244 = vdwg.mxu0
    %v245 = vmax.f32 %v239, 0.0
    %v246 = vmax.f32 %v242, 0.0
    %v247 = vpack.c.bf16 %v246, %v245
    %v248 = vld [vmem:[#allocation7] sm:$0xff]
    %v249 = vld [vmem:[#allocation7 + $0x8] sm:$0xff]
    %v250 = vld [vmem:[#allocation7 + $0x10] sm:$0xff]
    %v251 = vld [vmem:[#allocation7 + $0x18] sm:$0xff]
    %v252 = vld [vmem:[#allocation7 + $0x20] sm:$0xff]
    %v253 = vld [vmem:[#allocation7 + $0x28] sm:$0xff]
    %v254 = vld [vmem:[#allocation7 + $0x30] sm:$0xff]
    %v255 = vld [vmem:[#allocation7 + $0x38] sm:$0xff]
    %v256 = vld [vmem:[#allocation7 + $0x40] sm:$0xff]
    %v257 = vld [vmem:[#allocation7 + $0x48] sm:$0xff]
    %v258 = vld [vmem:[#allocation7 + $0x50] sm:$0xff]
    %v259 = vld [vmem:[#allocation7 + $0x58] sm:$0xff]
    %v260 = vld [vmem:[#allocation7 + $0x60] sm:$0xff]
    %v261 = vld [vmem:[#allocation7 + $0x68] sm:$0xff]
    %v262 = vld [vmem:[#allocation7 + $0x70] sm:$0xff]
    %v263 = vld [vmem:[#allocation7 + $0x78] sm:$0xff]
    %v264 = vld [vmem:[%s4] sm:$0x3]
    %v266 = vlaneseq
    %v267 = vshrl.u32 %v266, 7
    %v268 = vsub.s32 0, %v267
    %v269 = vrot.slane %v264, %v268
    %v270 = vlaneseq
    %v271 = vshrl.u32 %v270, 7
    %v272 = vsub.s32 1, %v271
    %v273 = vrot.slane %v264, %v272
    %v292 = vunpack.c.l.b16 %v248
    %v293 = vunpack.c.h.b16 %v248
    %v294 = vunpack.c.l.b16 %v249
    %v295 = vunpack.c.h.b16 %v249
    %v296 = vunpack.c.l.b16 %v250
    %v297 = vunpack.c.h.b16 %v250
    %v298 = vunpack.c.l.b16 %v251
    %v299 = vunpack.c.h.b16 %v251
    %v300 = vunpack.c.l.b16 %v252
    %v301 = vunpack.c.h.b16 %v252
    %v302 = vunpack.c.l.b16 %v253
    %v303 = vunpack.c.h.b16 %v253
    %v304 = vunpack.c.l.b16 %v254
    %v305 = vunpack.c.h.b16 %v254
    %v306 = vunpack.c.l.b16 %v255
    %v307 = vunpack.c.h.b16 %v255
    %v308 = vunpack.c.l.b16 %v256
    %v309 = vunpack.c.h.b16 %v256
    %v310 = vunpack.c.l.b16 %v257
    %v311 = vunpack.c.h.b16 %v257
    %v312 = vunpack.c.l.b16 %v258
    %v313 = vunpack.c.h.b16 %v258
    %v314 = vunpack.c.l.b16 %v259
    %v315 = vunpack.c.h.b16 %v259
    %v316 = vunpack.c.l.b16 %v260
    %v317 = vunpack.c.h.b16 %v260
    %v318 = vunpack.c.l.b16 %v261
    %v319 = vunpack.c.h.b16 %v261
    %v320 = vunpack.c.l.b16 %v262
    %v321 = vunpack.c.h.b16 %v262
    %v322 = vunpack.c.l.b16 %v263
    %v323 = vunpack.c.h.b16 %v263
    %v324 = vpack.c.b16 %v294, %v292
    %v325 = vpack.c.b16 %v295, %v293
    %v326 = vpack.c.b16 %v298, %v296
    %v327 = vpack.c.b16 %v299, %v297
    %v328 = vpack.c.b16 %v302, %v300
    %v329 = vpack.c.b16 %v303, %v301
    %v330 = vpack.c.b16 %v306, %v304
    %v331 = vpack.c.b16 %v307, %v305
    %v332 = vpack.c.b16 %v310, %v308
    %v333 = vpack.c.b16 %v311, %v309
    %v334 = vpack.c.b16 %v314, %v312
    %v335 = vpack.c.b16 %v315, %v313
    %v336 = vpack.c.b16 %v318, %v316
    %v337 = vpack.c.b16 %v319, %v317
    %v338 = vpack.c.b16 %v322, %v320
    %v339 = vpack.c.b16 %v323, %v321
    %356 = vmatprep.subr.bf16.mxu0 %v325
    %357 = vmatpush1.bf16.msra.mxu0 %v324
    %358 = vmatprep.subr.bf16.mxu0 %v327
    %359 = vmatpush1.bf16.msra.mxu0 %v326
    %360 = vmatprep.subr.bf16.mxu0 %v329
    %361 = vmatpush1.bf16.msra.mxu0 %v328
    %362 = vmatprep.subr.bf16.mxu0 %v331
    %363 = vmatpush1.bf16.msra.mxu0 %v330
    %364 = vmatprep.subr.bf16.mxu0 %v333
    %365 = vmatpush1.bf16.msra.mxu0 %v332
    %366 = vmatprep.subr.bf16.mxu0 %v335
    %367 = vmatpush1.bf16.msra.mxu0 %v334
    %368 = vmatprep.subr.bf16.mxu0 %v337
    %369 = vmatpush1.bf16.msra.mxu0 %v336
    %370 = vmatprep.subr.bf16.mxu0 %v339
    %371 = vmatpush1.bf16.msra.mxu0 %v338
    %372 = vmatprep.subr.bf16.mxu0 0
    %373 = vmatpush1.bf16.msra.mxu0 0
    %374 = vmatprep.subr.bf16.mxu0 0
    %375 = vmatpush1.bf16.msra.mxu0 0
    %376 = vmatprep.subr.bf16.mxu0 0
    %377 = vmatpush1.bf16.msra.mxu0 0
    %378 = vmatprep.subr.bf16.mxu0 0
    %379 = vmatpush1.bf16.msra.mxu0 0
    %380 = vmatprep.subr.bf16.mxu0 0
    %381 = vmatpush1.bf16.msra.mxu0 0
    %382 = vmatprep.subr.bf16.mxu0 0
    %383 = vmatpush1.bf16.msra.mxu0 0
    %384 = vmatprep.subr.bf16.mxu0 0
    %385 = vmatpush1.bf16.msra.mxu0 0
    %386 = vmatprep.subr.bf16.mxu0 0
    %387 = vmatpush1.bf16.msra.mxu0 0
    %388 = vmatprep.mubr.bf16.mxu0 0
    %389 = vmatmul.mubr.bf16.gmra.mrb[0].mxu0 %v247
    %v390 = vpop.f32.mrb[0].mxu0
    %v391 = vadd.f32 %v269, %v390
    %v392 = vpop.f32.mrb[0].mxu0
    %v393 = vadd.f32 %v273, %v392
    %v394 = vpop.f32.mrb[0].mxu0
    %v395 = vadd.f32 %v269, %v394
    %v396 = vpop.f32.mrb[0].mxu0
    %v397 = vadd.f32 %v273, %v396
    %398 = vdwg.mxu0
    %399 = vst [vmem:[#allocation8] sm:$0xff] %v391
    %400 = vst [vmem:[#allocation8 + $0x8] sm:$0xff] %v393
    %401 = vst [vmem:[#allocation8 + $0x10] sm:$0xff] %v395
    %402 = vst [vmem:[#allocation8 + $0x18] sm:$0xff] %v397
    // Predicated region
    $region34: #{tpu_custom_call.1} parent=1 // pred_check
      _
    $region35: #{tpu_custom_call.1} parent=1 // pred_check_branch
      %404 = sbr.rel (0) target = $region37
    $region36: #{tpu_custom_call.1} parent=1 // pred_region
      %s406 = ssub.s32 512, 512
      %407 = vsyncadd [#allocation4], %s406
      %s408 = sshll.u32 [#allocation8], 4
      %s409 = int_to_ptr.vmem [resolvable:$true] %s408
      %414 = dma.vmem_to_hbm [thread:$0]  %s409, 512, %s5, [#allocation4], 256, 256, 16
    $region37: #{tpu_custom_call.1} parent=1 // pred_fallthru
      _
    // Predicated region
    $region38: #{tpu_custom_call.1} parent=1 // pred_check
      _
    $region39: #{tpu_custom_call.1} parent=1 // pred_check_branch
      %416 = sbr.rel (0) target = $region41
    $region40: #{tpu_custom_call.1} parent=1 // pred_region
      %417 = dma.done [#allocation4], 512
    $region41: #{tpu_custom_call.1} parent=1 // pred_fallthru
      _
    %418 = vsyncpa [#allocation3], 1
    %419 = vsyncpa [#allocation6], 1
    %420 = vsyncpa [#allocation4], 1

</llo_original>
